<compile_context>
chip_gen: v7x
topology: tpu7x:2x2x1
jax: 0.10.0
libtpu: 0.0.40
codegen_flags: <defaults>
</compile_context>

<pallas_src>
import jax
import jax.numpy as jnp
from jax.experimental import pallas as pl
from jax.experimental.pallas import tpu as pltpu

_LANE = 128
_SUBLANE = 8


def knowledge_enhancer_kernel(x_ref, w1_ref, b1_ref, w2_ref, b2_ref, o_ref):
    # Linear 1 (bf16 MXU operands, f32 accumulate) + bias + ReLU (f32 epilogue).
    h = jnp.dot(x_ref[...].astype(jnp.bfloat16), w1_ref[...],
                preferred_element_type=jnp.float32) + b1_ref[...]
    h = jnp.maximum(h, 0.0)

    # Linear 2 (bf16 MXU) + sigmoid via EUP exp + approx reciprocal.
    z = jnp.dot(h.astype(jnp.bfloat16), w2_ref[...],
                preferred_element_type=jnp.float32) + b2_ref[...]
    g = pl.reciprocal(1.0 + jnp.exp(-z), approx=True)

    # Residual add: re-load x here (short live range), add in f32, store in
    # the activation dtype (f32 or bf16).
    o_ref[...] = (x_ref[...].astype(jnp.float32) + g).astype(o_ref.dtype)


def _round_up(a, m):
    return (a + m - 1) // m * m


def _vmem_capacity_bytes():
    try:
        return int(pltpu.get_tpu_info().vmem_capacity_bytes)
    except Exception:
        return 64 << 20  # conservative (v7x per-TensorCore VMEM)


def prepare_params(w1, b1, w2, b2):
    """One-time parameter prep: pad D up to a multiple of 128 (lane-dense) and
    cast weights to bf16.  Do this at model-setup time, not per forward call."""
    D = w1.shape[0]
    D_pad = max(_round_up(D, _LANE), _LANE)
    w1p = jnp.zeros((D_pad, D_pad), jnp.bfloat16).at[:D, :D].set(
        w1.astype(jnp.bfloat16))
    w2p = jnp.zeros((D_pad, D_pad), jnp.bfloat16).at[:D, :D].set(
        w2.astype(jnp.bfloat16))
    b1p = jnp.zeros((1, D_pad), jnp.float32).at[0, :D].set(
        b1.astype(jnp.float32))
    b2p = jnp.zeros((1, D_pad), jnp.float32).at[0, :D].set(
        b2.astype(jnp.float32))
    return {"dim": D, "dim_pad": D_pad, "w1": w1p, "b1": b1p,
            "w2": w2p, "b2": b2p}


def knowledge_enhancer(x, params, *, tile_n=None):
    """x: (..., D) float32 or bfloat16. Returns x + rule_net(x)."""
    D, D_pad = params["dim"], params["dim_pad"]
    assert x.shape[-1] == D
    orig_shape, act_dtype = x.shape, x.dtype
    act_bytes = jnp.dtype(act_dtype).itemsize
    x2 = x.reshape(-1, D)
    N = x2.shape[0]

    cap = _vmem_capacity_bytes()
    # Single-buffered resident bf16 weights + f32 biases.
    weight_bytes = 2 * D_pad * D_pad * 2 + 2 * D_pad * 4

    if tile_n is None:
        # Per-row VMEM: double-buffered x + out tiles, f32 h/z intermediates,
        # bf16 copies of x and h for the MXU.
        per_row = D_pad * (4 * act_bytes + 4 + 4 + 2 + 2)
        avail = max(int(0.80 * cap) - weight_bytes - (2 << 20),
                    per_row * _SUBLANE)
        tile_n = _SUBLANE
        for t in (1024, 512, 256, 128, 64, 32, 16, 8):
            if t * per_row <= avail:
                tile_n = t
                break
    # Keep >= 2 row-grid steps whenever N allows, so "parallel" megacore
    # sharding on v7x gives both TensorCores work (no-op on v5e/v6e).
    tile_n = min(tile_n, max(_round_up(pl.cdiv(N, 2), _SUBLANE), _SUBLANE))
    tile_n = max(_SUBLANE,
                 _round_up(min(tile_n, _round_up(N, _SUBLANE)), _SUBLANE))

    N_pad = _round_up(N, tile_n)
    pad_needed = (N_pad != N) or (D_pad != D)
    if pad_needed:
        # Zero padding: padded hidden columns give relu(0)=0 into the second
        # matmul, so valid output columns are unaffected; padded rows/cols are
        # sliced off below.
        x_in = jnp.zeros((N_pad, D_pad), act_dtype).at[:N, :D].set(x2)
    else:
        x_in = x2

    grid = (N_pad // tile_n,)

    # Resident operands: constant index_map + single buffer (no double
    # buffering of weights -> half the resident VMEM).
    resident_w = pl.BlockSpec((D_pad, D_pad), lambda i: (0, 0),
                              pipeline_mode=pl.Buffered(1))
    resident_b = pl.BlockSpec((1, D_pad), lambda i: (0, 0),
                              pipeline_mode=pl.Buffered(1))

    est = (weight_bytes
           + 4 * tile_n * D_pad * act_bytes          # double-buffered x + out
           + tile_n * D_pad * (4 + 4 + 2 + 2)        # h/z f32 + bf16 MXU copies
           + (4 << 20))                              # slack
    vmem_bytes = int(min(max(est, 16 << 20), int(0.85 * cap)))

    cost = pl.CostEstimate(
        flops=2 * 2 * N_pad * D_pad * D_pad,             # two matmuls
        transcendentals=2 * N_pad * D_pad,               # exp + reciprocal
        bytes_accessed=2 * N_pad * D_pad * act_bytes + 2 * D_pad * D_pad * 2,
    )

    out = pl.pallas_call(
        knowledge_enhancer_kernel,
        out_shape=jax.ShapeDtypeStruct((N_pad, D_pad), act_dtype),
        grid=grid,
        in_specs=[
            pl.BlockSpec((tile_n, D_pad), lambda i: (i, 0)),  # x tile (pipelined)
            resident_w,                                       # W1 (VMEM-resident)
            resident_b,                                       # b1
            resident_w,                                       # W2
            resident_b,                                       # b2
        ],
        out_specs=pl.BlockSpec((tile_n, D_pad), lambda i: (i, 0)),
        compiler_params=pltpu.CompilerParams(
            dimension_semantics=("parallel",),  # megacore row-sharding on v7x
            vmem_limit_bytes=vmem_bytes,
        ),
        cost_estimate=cost,
        # Reuse the padded x slab for the output only when it is a fresh
        # temporary (avoid silently donating the caller's buffer otherwise).
        input_output_aliases={0: 0} if pad_needed else {},
    )(x_in, params["w1"], params["b1"], params["w2"], params["b2"])

    if pad_needed:
        out = out[:N, :D]
    return out.reshape(orig_shape)
    # TODO(synk): for D_pad >= 4096 on v7x (>= 64 MiB of bf16 weights alone)
    # switch to a hidden/column-split grid axis with an f32 accumulator
    # instead of keeping both weights VMEM-resident.


def init_params(key, dim):
    """Deterministic init mimicking torch.nn.Linear defaults
    (uniform(-1/sqrt(in), 1/sqrt(in)) for both weight and bias)."""
    k1, k2, k3, k4 = jax.random.split(key, 4)
    bound = 1.0 / jnp.sqrt(jnp.float32(dim))
    # Stored as (in, out) so the kernel computes x @ W + b.
    w1 = jax.random.uniform(k1, (dim, dim), jnp.float32, -bound, bound)
    b1 = jax.random.uniform(k2, (dim,), jnp.float32, -bound, bound)
    w2 = jax.random.uniform(k3, (dim, dim), jnp.float32, -bound, bound)
    b2 = jax.random.uniform(k4, (dim,), jnp.float32, -bound, bound)
    return w1, b1, w2, b2


if __name__ == "__main__":
    key = jax.random.PRNGKey(0)
    kx, kp = jax.random.split(key)

    batch, seq, dim = 2, 8, 32
    x = jax.random.normal(kx, (batch, seq, dim), jnp.float32)
    w1, b1, w2, b2 = init_params(kp, dim)

    # Weights padded + cast once, outside the per-call path.
    params = prepare_params(w1, b1, w2, b2)

    @jax.jit
    def fwd(xx):
        return knowledge_enhancer(xx, params)

    out = jax.block_until_ready(fwd(x))

    # Reference check in plain JAX (same math as the PyTorch module).
    # Tolerance covers bf16 MXU operands + the approx-reciprocal sigmoid.
    h = jnp.maximum(x @ w1 + b1, 0.0)
    ref = x + jax.nn.sigmoid(h @ w2 + b2)
    assert out.shape == x.shape
    assert jnp.allclose(out, ref, atol=2e-2, rtol=2e-2), "mismatch vs reference"

    print("KERNEL_OK")
</pallas_src>

<mosaic_0001>
module attributes {stable_mosaic.version = 11 : i64} {
  func.func @knowledge_enhancer_kernel(%arg0: i32, %arg1: memref<8x128xf32, #tpu.memory_space<vmem>>, %arg2: memref<128x128xbf16, #tpu.memory_space<vmem>>, %arg3: memref<1x128xf32, #tpu.memory_space<vmem>>, %arg4: memref<128x128xbf16, #tpu.memory_space<vmem>>, %arg5: memref<1x128xf32, #tpu.memory_space<vmem>>, %arg6: memref<8x128xf32, #tpu.memory_space<vmem>>) attributes {dimension_semantics = [#tpu.dimension_semantics<parallel>], iteration_bounds = array<i64: 2>, scalar_prefetch = 0 : i64, scratch_operands = 0 : i64, tpu.core_type = #tpu.core_type<tc>, window_params = [{transform_indices = @transform_0, window_bounds = array<i64: 8, 128>}, {pipeline_mode = #tpu.pipeline_mode<synchronous>, transform_indices = @transform_1, window_bounds = array<i64: 128, 128>}, {pipeline_mode = #tpu.pipeline_mode<synchronous>, transform_indices = @transform_2, window_bounds = array<i64: 1, 128>}, {pipeline_mode = #tpu.pipeline_mode<synchronous>, transform_indices = @transform_3, window_bounds = array<i64: 128, 128>}, {pipeline_mode = #tpu.pipeline_mode<synchronous>, transform_indices = @transform_4, window_bounds = array<i64: 1, 128>}, {transform_indices = @transform_5, window_bounds = array<i64: 8, 128>}]} {
    %c0 = arith.constant 0 : index
    %c0_0 = arith.constant 0 : index
    %0 = vector.load %arg1[%c0, %c0_0] : memref<8x128xf32, #tpu.memory_space<vmem>>, vector<8x128xf32>
    %1 = arith.truncf %0 : vector<8x128xf32> to vector<8x128xbf16>
    %c0_1 = arith.constant 0 : index
    %c0_2 = arith.constant 0 : index
    %2 = vector.load %arg2[%c0_1, %c0_2] : memref<128x128xbf16, #tpu.memory_space<vmem>>, vector<128x128xbf16>
    %cst = arith.constant dense<0.000000e+00> : vector<8x128xf32>
    %3 = tpu.matmul %1, %2, %cst {dimension_numbers = #tpu.dot_dimension_numbers<[1], [0], [0], [1], [0, 0, 1, 1], [], []>} : vector<8x128xbf16>, vector<128x128xbf16>, vector<8x128xf32> -> vector<8x128xf32>
    %c0_3 = arith.constant 0 : index
    %c0_4 = arith.constant 0 : index
    %4 = vector.load %arg3[%c0_3, %c0_4] : memref<1x128xf32, #tpu.memory_space<vmem>>, vector<1x128xf32>
    %5 = vector.broadcast %4 : vector<1x128xf32> to vector<8x128xf32>
    %6 = arith.addf %3, %5 : vector<8x128xf32>
    %cst_5 = arith.constant 0.000000e+00 : f32
    %7 = vector.broadcast %cst_5 : f32 to vector<8x128xf32>
    %8 = arith.maximumf %6, %7 : vector<8x128xf32>
    %9 = arith.truncf %8 : vector<8x128xf32> to vector<8x128xbf16>
    %c0_6 = arith.constant 0 : index
    %c0_7 = arith.constant 0 : index
    %10 = vector.load %arg4[%c0_6, %c0_7] : memref<128x128xbf16, #tpu.memory_space<vmem>>, vector<128x128xbf16>
    %cst_8 = arith.constant dense<0.000000e+00> : vector<8x128xf32>
    %11 = tpu.matmul %9, %10, %cst_8 {dimension_numbers = #tpu.dot_dimension_numbers<[1], [0], [0], [1], [0, 0, 1, 1], [], []>} : vector<8x128xbf16>, vector<128x128xbf16>, vector<8x128xf32> -> vector<8x128xf32>
    %c0_9 = arith.constant 0 : index
    %c0_10 = arith.constant 0 : index
    %12 = vector.load %arg5[%c0_9, %c0_10] : memref<1x128xf32, #tpu.memory_space<vmem>>, vector<1x128xf32>
    %13 = vector.broadcast %12 : vector<1x128xf32> to vector<8x128xf32>
    %14 = arith.addf %11, %13 : vector<8x128xf32>
    %cst_11 = arith.constant 0.000000e+00 : f32
    %15 = vector.broadcast %cst_11 : f32 to vector<8x128xf32>
    %16 = arith.subf %15, %14 : vector<8x128xf32>
    %17 = math.exp %16 : vector<8x128xf32>
    %cst_12 = arith.constant 1.000000e+00 : f32
    %18 = vector.broadcast %cst_12 : f32 to vector<8x128xf32>
    %19 = arith.addf %18, %17 : vector<8x128xf32>
    %20 = tpu.reciprocal %19 {approx = true} : vector<8x128xf32> -> vector<8x128xf32>
    %c0_13 = arith.constant 0 : index
    %c0_14 = arith.constant 0 : index
    %21 = vector.load %arg1[%c0_13, %c0_14] : memref<8x128xf32, #tpu.memory_space<vmem>>, vector<8x128xf32>
    %22 = arith.addf %21, %20 : vector<8x128xf32>
    %c0_15 = arith.constant 0 : index
    %c0_16 = arith.constant 0 : index
    %23 = vector.load %arg6[%c0_15, %c0_16] : memref<8x128xf32, #tpu.memory_space<vmem>>, vector<8x128xf32>
    tpu.vector_store %arg6[%c0_15, %c0_16], %22 {strides = array<i32>} : memref<8x128xf32, #tpu.memory_space<vmem>>, vector<8x128xf32>,
    return
  }
  func.func @transform_0(%arg0: i32) -> (i32, i32) {
    %c0_i32 = arith.constant 0 : i32
    %c0_i32_0 = arith.constant 0 : i32
    return %arg0, %c0_i32 : i32, i32
  }
  func.func @transform_1(%arg0: i32) -> (i32, i32) {
    %c0_i32 = arith.constant 0 : i32
    %c0_i32_0 = arith.constant 0 : i32
    %c0_i32_1 = arith.constant 0 : i32
    return %c0_i32, %c0_i32_0 : i32, i32
  }
  func.func @transform_2(%arg0: i32) -> (i32, i32) {
    %c0_i32 = arith.constant 0 : i32
    %c0_i32_0 = arith.constant 0 : i32
    %c0_i32_1 = arith.constant 0 : i32
    return %c0_i32, %c0_i32_0 : i32, i32
  }
  func.func @transform_3(%arg0: i32) -> (i32, i32) {
    %c0_i32 = arith.constant 0 : i32
    %c0_i32_0 = arith.constant 0 : i32
    %c0_i32_1 = arith.constant 0 : i32
    return %c0_i32, %c0_i32_0 : i32, i32
  }
  func.func @transform_4(%arg0: i32) -> (i32, i32) {
    %c0_i32 = arith.constant 0 : i32
    %c0_i32_0 = arith.constant 0 : i32
    %c0_i32_1 = arith.constant 0 : i32
    return %c0_i32, %c0_i32_0 : i32, i32
  }
  func.func @transform_5(%arg0: i32) -> (i32, i32) {
    %c0_i32 = arith.constant 0 : i32
    %c0_i32_0 = arith.constant 0 : i32
    return %arg0, %c0_i32 : i32, i32
  }
}

</mosaic_0001>

<llo_original>
// kernel: fwd.1
$region0: #{fwd.1}
  #allocation0 [shape = 'u32[]', space=smem, size = 0x4, offset = 0x4, fixed_abs, tag = 'smem constant byte address 0x4 - core index']
  #allocation1 [shape = 'u32[144,128]{1,0:T(1,128)}', space=vmem, size = 0x12000, scoped, tag = 'internal scratch']
  %s0 = inlined_call_operand.vmem [shape: f32[16,128], index: 0, kind: input, shape index: {}, may-alias: {0,5}]
  %s1 = inlined_call_operand.hbm [shape: bf16[128,128], index: 1, kind: input, shape index: {}]
  %s2 = inlined_call_operand.vmem [shape: f32[1,128], index: 2, kind: input, shape index: {}]
  %s3 = inlined_call_operand.vmem [shape: bf16[128,128], index: 3, kind: input, shape index: {}]
  %s4 = inlined_call_operand.vmem [shape: f32[1,128], index: 4, kind: input, shape index: {}]
  %s5 = inlined_call_operand.vmem [shape: f32[16,128], index: 5, kind: output, shape index: {}, may-alias: {0,5}]
  %s6 = sld [smem:[#allocation0]]
  $region57: #{fwd.1} parent=0
    _
  %s8 = ssub.s32 1, %s6
  %s9 = scalar_select 0, %s8, %s6
  $region1: #{fwd.1} parent=0
    #allocation2 [shape = 'u8[32768]{0}', space=vmem, size = 0x8000, scoped, tag = 'input window, operand 1, single buffered']
    #allocation3 [shape = 's32[2]{0}', space=sflag, size = 0x8, scoped, tag = 'scoped memory for fwd.1']
    %10 = vsyncpa [#allocation3], 0
    loop: start=0, step=1, limit=4
    $region2: #{fwd.1} parent=1 // loop_pre_header
      _
    $region3: #{fwd.1} parent=1 // loop_header
      %s12 = sphi 0, %s16
      %p13 = scmp.ge.s32.totalorder %s12, 4
      %s22 = sphi 0, %s24
      %s25 = sphi 0, %s22
      %s26 = sphi 0, %s25
      %s42 = sphi 0, %s26
      %s46 = sphi 0, %s46
      %s48 = sphi 0, %s46
      %s49 = sphi 0, %s48
      %s63 = sphi 0, %s49
      %s67 = sphi 0, %s67
      %s69 = sphi 0, %s67
      %s70 = sphi 0, %s69
      %s84 = sphi 0, %s70
      %s88 = sphi 0, %s88
      %s90 = sphi 0, %s88
      %s91 = sphi 0, %s90
      %s105 = sphi 0, %s91
      %s109 = sphi 0, %s109
      %s111 = sphi 0, %s109
      %s112 = sphi 0, %s111
      %s126 = sphi 0, %s112
      %s132 = sphi 0, %s134
      %s135 = sphi 0, %s132
      %s136 = sphi 0, %s135
      %s152 = sphi 0, %s136
    $region4: #{fwd.1} parent=1 // loop_header_branch
      %15 = sbr.rel (%p13) target = $region8
    $region5: #{fwd.1} parent=1 // loop_body
      %s17 = ssub.s32 %s12, 1
      %s18 = ssub.s32 %s12, 2
      %s19 = sadd.s32 %s12, 1
      %s20 = ssub.s32 %s12, %s19
      %p21 = scmp.eq.s32.totalorder %s20, 0
      %s23 = sadd.s32 %s22, 1
      %s24 = scalar_select %p21, %s22, %s23
      %p27 = pneg %p21
      %p28 = scmp.eq.s32.totalorder %s12, 1
      %p29 = por %p27, %p28
      %p30 = scmp.ne.s32.totalorder %s22, %s25
      %p31 = scmp.eq.s32.totalorder %s12, 0
      %p32 = por %p30, %p31
      %p33 = scmp.ne.s32.totalorder %s22, %s25
      %p34 = scmp.eq.s32.totalorder %s17, 1
      %p35 = por %p33, %p34
      %p36 = scmp.ne.s32.totalorder %s25, %s26
      %p37 = scmp.eq.s32.totalorder %s17, 0
      %p38 = por %p36, %p37
      %p39 = scmp.ne.s32.totalorder %s25, %s26
      %p40 = scmp.eq.s32.totalorder %s18, 1
      %p41 = por %p39, %p40
      %p43 = scmp.ne.s32.totalorder %s26, %s42
      %p44 = scmp.eq.s32.totalorder %s18, 0
      %p45 = por %p43, %p44
      %s47 = sadd.s32 %s46, 1
      %p50 = scmp.eq.s32.totalorder %s12, 1
      %p51 = scmp.ne.s32.totalorder %s46, %s48
      %p52 = scmp.eq.s32.totalorder %s12, 0
      %p53 = por %p51, %p52
      %p54 = scmp.ne.s32.totalorder %s46, %s48
      %p55 = scmp.eq.s32.totalorder %s17, 1
      %p56 = por %p54, %p55
      %p57 = scmp.ne.s32.totalorder %s48, %s49
      %p58 = scmp.eq.s32.totalorder %s17, 0
      %p59 = por %p57, %p58
      %p60 = scmp.ne.s32.totalorder %s48, %s49
      %p61 = scmp.eq.s32.totalorder %s18, 1
      %p62 = por %p60, %p61
      %p64 = scmp.ne.s32.totalorder %s49, %s63
      %p65 = scmp.eq.s32.totalorder %s18, 0
      %p66 = por %p64, %p65
      %s68 = sadd.s32 %s67, 1
      %p71 = scmp.eq.s32.totalorder %s12, 1
      %p72 = scmp.ne.s32.totalorder %s67, %s69
      %p73 = scmp.eq.s32.totalorder %s12, 0
      %p74 = por %p72, %p73
      %p75 = scmp.ne.s32.totalorder %s67, %s69
      %p76 = scmp.eq.s32.totalorder %s17, 1
      %p77 = por %p75, %p76
      %p78 = scmp.ne.s32.totalorder %s69, %s70
      %p79 = scmp.eq.s32.totalorder %s17, 0
      %p80 = por %p78, %p79
      %p81 = scmp.ne.s32.totalorder %s69, %s70
      %p82 = scmp.eq.s32.totalorder %s18, 1
      %p83 = por %p81, %p82
      %p85 = scmp.ne.s32.totalorder %s70, %s84
      %p86 = scmp.eq.s32.totalorder %s18, 0
      %p87 = por %p85, %p86
      %s89 = sadd.s32 %s88, 1
      %p92 = scmp.eq.s32.totalorder %s12, 1
      %p93 = scmp.ne.s32.totalorder %s88, %s90
      %p94 = scmp.eq.s32.totalorder %s12, 0
      %p95 = por %p93, %p94
      %p96 = scmp.ne.s32.totalorder %s88, %s90
      %p97 = scmp.eq.s32.totalorder %s17, 1
      %p98 = por %p96, %p97
      %p99 = scmp.ne.s32.totalorder %s90, %s91
      %p100 = scmp.eq.s32.totalorder %s17, 0
      %p101 = por %p99, %p100
      %p102 = scmp.ne.s32.totalorder %s90, %s91
      %p103 = scmp.eq.s32.totalorder %s18, 1
      %p104 = por %p102, %p103
      %p106 = scmp.ne.s32.totalorder %s91, %s105
      %p107 = scmp.eq.s32.totalorder %s18, 0
      %p108 = por %p106, %p107
      %s110 = sadd.s32 %s109, 1
      %p113 = scmp.eq.s32.totalorder %s12, 1
      %p114 = scmp.ne.s32.totalorder %s109, %s111
      %p115 = scmp.eq.s32.totalorder %s12, 0
      %p116 = por %p114, %p115
      %p117 = scmp.ne.s32.totalorder %s109, %s111
      %p118 = scmp.eq.s32.totalorder %s17, 1
      %p119 = por %p117, %p118
      %p120 = scmp.ne.s32.totalorder %s111, %s112
      %p121 = scmp.eq.s32.totalorder %s17, 0
      %p122 = por %p120, %p121
      %p123 = scmp.ne.s32.totalorder %s111, %s112
      %p124 = scmp.eq.s32.totalorder %s18, 1
      %p125 = por %p123, %p124
      %p127 = scmp.ne.s32.totalorder %s112, %s126
      %p128 = scmp.eq.s32.totalorder %s18, 0
      %p129 = por %p127, %p128
      %s130 = ssub.s32 %s12, %s19
      %p131 = scmp.eq.s32.totalorder %s130, 0
      %s133 = sadd.s32 %s132, 1
      %s134 = scalar_select %p131, %s132, %s133
      %p137 = pneg %p131
      %p138 = scmp.eq.s32.totalorder %s12, 1
      %p139 = por %p137, %p138
      %p140 = scmp.ne.s32.totalorder %s132, %s135
      %p141 = scmp.eq.s32.totalorder %s12, 0
      %p142 = por %p140, %p141
      %p143 = scmp.ne.s32.totalorder %s132, %s135
      %p144 = scmp.eq.s32.totalorder %s17, 1
      %p145 = por %p143, %p144
      %p146 = scmp.ne.s32.totalorder %s135, %s136
      %p147 = scmp.eq.s32.totalorder %s17, 0
      %p148 = por %p146, %p147
      %p149 = scmp.ne.s32.totalorder %s135, %s136
      %p150 = scmp.eq.s32.totalorder %s18, 1
      %p151 = por %p149, %p150
      %p153 = scmp.ne.s32.totalorder %s136, %s152
      %p154 = scmp.eq.s32.totalorder %s18, 0
      %p155 = por %p153, %p154
      %p156 = scmp.le.s32.totalorder 1, %s12
      %p157 = scmp.lt.s32.totalorder %s12, 3
      %p158 = pnand %p156, %p157
      %p159 = pneg %p158
      // Predicated region
      $region9: #{fwd.1} parent=5 // pred_check
        _
      $region10: #{fwd.1} parent=5 // pred_check_branch
        %161 = sbr.rel (%p158) target = $region12
      $region11: #{fwd.1} parent=5 // pred_region
        %s162 = ssub.s32 %s12, 1
        // Predicated region
        $region13: #{fwd.1} parent=11 // pred_check
          %p163 = pneg %p59
        $region14: #{fwd.1} parent=11 // pred_check_branch
          %165 = sbr.rel (%p163) target = $region16
        $region15: #{fwd.1} parent=11 // pred_region
          %s167 = ssub.s32 1024, 1024
          %168 = vsyncadd [#allocation3], %s167
          %s169 = sshll.u32 [#allocation2], 4
          %s170 = int_to_ptr.vmem [resolvable:$true] %s169
          %175 = dma.hbm_to_vmem [thread:$0]  %s1, 1024, %s170, [#allocation3], 64, 64, 4
        $region16: #{fwd.1} parent=11 // pred_fallthru
          _
        // Predicated region
        $region17: #{fwd.1} parent=11 // pred_check
          %p176 = pneg %p80
        $region18: #{fwd.1} parent=11 // pred_check_branch
          %178 = sbr.rel (%p176) target = $region20
        $region19: #{fwd.1} parent=11 // pred_region
          _
        $region20: #{fwd.1} parent=11 // pred_fallthru
          _
        // Predicated region
        $region21: #{fwd.1} parent=11 // pred_check
          %p179 = pneg %p101
        $region22: #{fwd.1} parent=11 // pred_check_branch
          %181 = sbr.rel (%p179) target = $region24
        $region23: #{fwd.1} parent=11 // pred_region
          _
        $region24: #{fwd.1} parent=11 // pred_fallthru
          _
        // Predicated region
        $region25: #{fwd.1} parent=11 // pred_check
          %p182 = pneg %p122
        $region26: #{fwd.1} parent=11 // pred_check_branch
          %184 = sbr.rel (%p182) target = $region28
        $region27: #{fwd.1} parent=11 // pred_region
          _
        $region28: #{fwd.1} parent=11 // pred_fallthru
          _
      $region12: #{fwd.1} parent=5 // pred_fallthru
        _
      %p185 = scmp.lt.s32.totalorder %s12, 2
      // Predicated region
      $region29: #{fwd.1} parent=5 // pred_check
        %p186 = pneg %p185
      $region30: #{fwd.1} parent=5 // pred_check_branch
        %188 = sbr.rel (%p186) target = $region32
      $region31: #{fwd.1} parent=5 // pred_region
        // Predicated region
        $region33: #{fwd.1} parent=31 // pred_check
          %p189 = pneg %p32
        $region34: #{fwd.1} parent=31 // pred_check_branch
          %191 = sbr.rel (%p189) target = $region36
        $region35: #{fwd.1} parent=31 // pred_region
          %p192 = scmp.lt.s32.totalorder %s12, 1
          %s193 = scalar_select %p192, %s12, 1
          %s194 = smul.addr %s193, 8
          %s195 = scalar_lea.vmem %s0, %s194
        $region36: #{fwd.1} parent=31 // pred_fallthru
          _
      $region32: #{fwd.1} parent=5 // pred_fallthru
        _
      %p196 = scmp.le.s32.totalorder 1, %s12
      %p197 = scmp.lt.s32.totalorder %s12, 3
      %p198 = pnand %p196, %p197
      %p199 = pneg %p198
      // Predicated region
      $region37: #{fwd.1} parent=5 // pred_check
        _
      $region38: #{fwd.1} parent=5 // pred_check_branch
        %201 = sbr.rel (%p198) target = $region40
      $region39: #{fwd.1} parent=5 // pred_region
        %s202 = ssub.s32 %s12, 1
        // Predicated region
        $region41: #{fwd.1} parent=39 // pred_check
          %p203 = pneg %p59
        $region42: #{fwd.1} parent=39 // pred_check_branch
          %205 = sbr.rel (%p203) target = $region44
        $region43: #{fwd.1} parent=39 // pred_region
          %206 = dma.done [#allocation3], 1024
        $region44: #{fwd.1} parent=39 // pred_fallthru
          _
        %p207 = scmp.lt.s32.totalorder %s17, 1
        %s208 = scalar_select %p207, %s17, 1
        %s209 = smul.addr %s208, 8
        %s210 = scalar_lea.vmem %s0, %s209
        %p211 = pneg %p38
        %p212 = pneg %p35
        %p213 = pneg %p59
        %p214 = pneg %p56
        %p215 = pneg %p80
        %p216 = pneg %p77
        %p217 = pneg %p101
        %p218 = pneg %p98
        %p219 = pneg %p122
        %p220 = pneg %p119
        %p221 = pneg %p148
        %p222 = pneg %p145
        %p223 = scmp.lt.s32.totalorder %s17, 1
        %s224 = scalar_select %p223, %s17, 1
        %s225 = smul.addr %s224, 8
        %s226 = scalar_lea.vmem %s5, %s225
        %p227 = scmp.lt.s32.totalorder %s17, 1
        %s228 = scalar_select %p227, %s17, 1
        %s229 = smul.addr %s228, 8
        %s230 = scalar_lea.vmem %s0, %s229
        %p231 = scmp.lt.s32.totalorder %s17, 1
        %s232 = scalar_select %p231, %s17, 1
        %s233 = smul.addr %s232, 8
        %s234 = scalar_lea.vmem %s5, %s233
        %v236 = vld [vmem:[%s230] sm:$0xff]
        %v237 = vpack.c.bf16 %v236, %v236
        %v238 = vld [vmem:[#allocation2] sm:$0xf]
        %v239 = vld [vmem:[#allocation2 + $0x4] sm:$0xf]
        %v240 = vld [vmem:[#allocation2 + $0x8] sm:$0xf]
        %v241 = vld [vmem:[#allocation2 + $0xc] sm:$0xf]
        %v242 = vld [vmem:[#allocation2 + $0x10] sm:$0xf]
        %v243 = vld [vmem:[#allocation2 + $0x14] sm:$0xf]
        %v244 = vld [vmem:[#allocation2 + $0x18] sm:$0xf]
        %v245 = vld [vmem:[#allocation2 + $0x1c] sm:$0xf]
        %v246 = vld [vmem:[#allocation2 + $0x20] sm:$0xf]
        %v247 = vld [vmem:[#allocation2 + $0x24] sm:$0xf]
        %v248 = vld [vmem:[#allocation2 + $0x28] sm:$0xf]
        %v249 = vld [vmem:[#allocation2 + $0x2c] sm:$0xf]
        %v250 = vld [vmem:[#allocation2 + $0x30] sm:$0xf]
        %v251 = vld [vmem:[#allocation2 + $0x34] sm:$0xf]
        %v252 = vld [vmem:[#allocation2 + $0x38] sm:$0xf]
        %v253 = vld [vmem:[#allocation2 + $0x3c] sm:$0xf]
        %v254 = vld [vmem:[%s2] sm:$0x1]
        %v256 = vlaneseq
        %v257 = vshrl.u32 %v256, 7
        %v258 = vsub.s32 0, %v257
        %v259 = vrot.slane %v254, %v258
        %v277 = vunpack.c.l.b16 %v238
        %v278 = vunpack.c.l.b16 %v239
        %v279 = vunpack.c.l.b16 %v240
        %v280 = vunpack.c.l.b16 %v241
        %v281 = vunpack.c.l.b16 %v242
        %v282 = vunpack.c.l.b16 %v243
        %v283 = vunpack.c.l.b16 %v244
        %v284 = vunpack.c.l.b16 %v245
        %v285 = vunpack.c.l.b16 %v246
        %v286 = vunpack.c.l.b16 %v247
        %v287 = vunpack.c.l.b16 %v248
        %v288 = vunpack.c.l.b16 %v249
        %v289 = vunpack.c.l.b16 %v250
        %v290 = vunpack.c.l.b16 %v251
        %v291 = vunpack.c.l.b16 %v252
        %v292 = vunpack.c.l.b16 %v253
        %v293 = vpack.c.b16 %v278, %v277
        %v294 = vpack.c.b16 %v280, %v279
        %v295 = vpack.c.b16 %v282, %v281
        %v296 = vpack.c.b16 %v284, %v283
        %v297 = vpack.c.b16 %v286, %v285
        %v298 = vpack.c.b16 %v288, %v287
        %v299 = vpack.c.b16 %v290, %v289
        %v300 = vpack.c.b16 %v292, %v291
        %309 = vmatprep.subr.bf16.mxu0 0
        %310 = vmatpush1.bf16.msra.mxu0 %v293
        %311 = vmatprep.subr.bf16.mxu0 0
        %312 = vmatpush1.bf16.msra.mxu0 %v294
        %313 = vmatprep.subr.bf16.mxu0 0
        %314 = vmatpush1.bf16.msra.mxu0 %v295
        %315 = vmatprep.subr.bf16.mxu0 0
        %316 = vmatpush1.bf16.msra.mxu0 %v296
        %317 = vmatprep.subr.bf16.mxu0 0
        %318 = vmatpush1.bf16.msra.mxu0 %v297
        %319 = vmatprep.subr.bf16.mxu0 0
        %320 = vmatpush1.bf16.msra.mxu0 %v298
        %321 = vmatprep.subr.bf16.mxu0 0
        %322 = vmatpush1.bf16.msra.mxu0 %v299
        %323 = vmatprep.subr.bf16.mxu0 0
        %324 = vmatpush1.bf16.msra.mxu0 %v300
        %325 = vmatprep.subr.bf16.mxu0 0
        %326 = vmatpush1.bf16.msra.mxu0 0
        %327 = vmatprep.subr.bf16.mxu0 0
        %328 = vmatpush1.bf16.msra.mxu0 0
        %329 = vmatprep.subr.bf16.mxu0 0
        %330 = vmatpush1.bf16.msra.mxu0 0
        %331 = vmatprep.subr.bf16.mxu0 0
        %332 = vmatpush1.bf16.msra.mxu0 0
        %333 = vmatprep.subr.bf16.mxu0 0
        %334 = vmatpush1.bf16.msra.mxu0 0
        %335 = vmatprep.subr.bf16.mxu0 0
        %336 = vmatpush1.bf16.msra.mxu0 0
        %337 = vmatprep.subr.bf16.mxu0 0
        %338 = vmatpush1.bf16.msra.mxu0 0
        %339 = vmatprep.subr.bf16.mxu0 0
        %340 = vmatpush1.bf16.msra.mxu0 0
        %341 = vmatprep.mubr.bf16.mxu0 0
        %342 = vmatmul.mubr.bf16.gmra.mrb[0].mxu0 %v237
        %v343 = vpop.f32.mrb[0].mxu0
        %v344 = vadd.f32 %v259, %v343
        %v345 = vpop.f32.mrb[0].mxu0
        %v346 = vpop.f32.mrb[0].mxu0
        %v347 = vpop.f32.mrb[0].mxu0
        %348 = vdwg.mxu0
        %v349 = vmax.f32 %v344, 0.0
        %v350 = vpack.c.bf16 %v349, %v349
        %v351 = vld [vmem:[%s3] sm:$0xf]
        %v352 = vld [vmem:[%s3 + $0x4] sm:$0xf]
        %v353 = vld [vmem:[%s3 + $0x8] sm:$0xf]
        %v354 = vld [vmem:[%s3 + $0xc] sm:$0xf]
        %v355 = vld [vmem:[%s3 + $0x10] sm:$0xf]
        %v356 = vld [vmem:[%s3 + $0x14] sm:$0xf]
        %v357 = vld [vmem:[%s3 + $0x18] sm:$0xf]
        %v358 = vld [vmem:[%s3 + $0x1c] sm:$0xf]
        %v359 = vld [vmem:[%s3 + $0x20] sm:$0xf]
        %v360 = vld [vmem:[%s3 + $0x24] sm:$0xf]
        %v361 = vld [vmem:[%s3 + $0x28] sm:$0xf]
        %v362 = vld [vmem:[%s3 + $0x2c] sm:$0xf]
        %v363 = vld [vmem:[%s3 + $0x30] sm:$0xf]
        %v364 = vld [vmem:[%s3 + $0x34] sm:$0xf]
        %v365 = vld [vmem:[%s3 + $0x38] sm:$0xf]
        %v366 = vld [vmem:[%s3 + $0x3c] sm:$0xf]
        %v367 = vld [vmem:[%s4] sm:$0x1]
        %v369 = vlaneseq
        %v370 = vshrl.u32 %v369, 7
        %v371 = vsub.s32 0, %v370
        %v372 = vrot.slane %v367, %v371
        %v390 = vunpack.c.l.b16 %v351
        %v391 = vunpack.c.l.b16 %v352
        %v392 = vunpack.c.l.b16 %v353
        %v393 = vunpack.c.l.b16 %v354
        %v394 = vunpack.c.l.b16 %v355
        %v395 = vunpack.c.l.b16 %v356
        %v396 = vunpack.c.l.b16 %v357
        %v397 = vunpack.c.l.b16 %v358
        %v398 = vunpack.c.l.b16 %v359
        %v399 = vunpack.c.l.b16 %v360
        %v400 = vunpack.c.l.b16 %v361
        %v401 = vunpack.c.l.b16 %v362
        %v402 = vunpack.c.l.b16 %v363
        %v403 = vunpack.c.l.b16 %v364
        %v404 = vunpack.c.l.b16 %v365
        %v405 = vunpack.c.l.b16 %v366
        %v406 = vpack.c.b16 %v391, %v390
        %v407 = vpack.c.b16 %v393, %v392
        %v408 = vpack.c.b16 %v395, %v394
        %v409 = vpack.c.b16 %v397, %v396
        %v410 = vpack.c.b16 %v399, %v398
        %v411 = vpack.c.b16 %v401, %v400
        %v412 = vpack.c.b16 %v403, %v402
        %v413 = vpack.c.b16 %v405, %v404
        %422 = vmatprep.subr.bf16.mxu0 0
        %423 = vmatpush1.bf16.msra.mxu0 %v406
        %424 = vmatprep.subr.bf16.mxu0 0
        %425 = vmatpush1.bf16.msra.mxu0 %v407
        %426 = vmatprep.subr.bf16.mxu0 0
        %427 = vmatpush1.bf16.msra.mxu0 %v408
        %428 = vmatprep.subr.bf16.mxu0 0
        %429 = vmatpush1.bf16.msra.mxu0 %v409
        %430 = vmatprep.subr.bf16.mxu0 0
        %431 = vmatpush1.bf16.msra.mxu0 %v410
        %432 = vmatprep.subr.bf16.mxu0 0
        %433 = vmatpush1.bf16.msra.mxu0 %v411
        %434 = vmatprep.subr.bf16.mxu0 0
        %435 = vmatpush1.bf16.msra.mxu0 %v412
        %436 = vmatprep.subr.bf16.mxu0 0
        %437 = vmatpush1.bf16.msra.mxu0 %v413
        %438 = vmatprep.subr.bf16.mxu0 0
        %439 = vmatpush1.bf16.msra.mxu0 0
        %440 = vmatprep.subr.bf16.mxu0 0
        %441 = vmatpush1.bf16.msra.mxu0 0
        %442 = vmatprep.subr.bf16.mxu0 0
        %443 = vmatpush1.bf16.msra.mxu0 0
        %444 = vmatprep.subr.bf16.mxu0 0
        %445 = vmatpush1.bf16.msra.mxu0 0
        %446 = vmatprep.subr.bf16.mxu0 0
        %447 = vmatpush1.bf16.msra.mxu0 0
        %448 = vmatprep.subr.bf16.mxu0 0
        %449 = vmatpush1.bf16.msra.mxu0 0
        %450 = vmatprep.subr.bf16.mxu0 0
        %451 = vmatpush1.bf16.msra.mxu0 0
        %452 = vmatprep.subr.bf16.mxu0 0
        %453 = vmatpush1.bf16.msra.mxu0 0
        %454 = vmatprep.mubr.bf16.mxu0 0
        %455 = vmatmul.mubr.bf16.gmra.mrb[0].mxu0 %v350
        %v456 = vpop.f32.mrb[0].mxu0
        %v457 = vadd.f32 %v372, %v456
        %v458 = vpop.f32.mrb[0].mxu0
        %v459 = vpop.f32.mrb[0].mxu0
        %v460 = vpop.f32.mrb[0].mxu0
        %461 = vdwg.mxu0
        %v462 = vsub.f32 0.0, %v457
        %v463 = vmul.f32 %v462, 1.442695
        %v464 = vpow.pop %v463
        %v465 = vadd.f32 %v464, 1.0
        %v466 = vrcp.pop %v465
        %v467 = vadd.f32 %v236, %v466
        %468 = vst [vmem:[%s234] sm:$0xff] %v467
        %p469 = scmp.lt.s32.totalorder %s17, 1
        %s470 = scalar_select %p469, %s17, 1
        %s471 = smul.addr %s470, 8
        %s472 = scalar_lea.vmem %s5, %s471
        // Predicated region
        $region45: #{fwd.1} parent=39 // pred_check
          %p473 = pneg %p145
        $region46: #{fwd.1} parent=39 // pred_check_branch
          %475 = sbr.rel (%p473) target = $region48
        $region47: #{fwd.1} parent=39 // pred_region
          _
        $region48: #{fwd.1} parent=39 // pred_fallthru
          _
      $region40: #{fwd.1} parent=5 // pred_fallthru
        _
      %p476 = scmp.le.s32.totalorder 2, %s12
      // Predicated region
      $region49: #{fwd.1} parent=5 // pred_check
        %p477 = pneg %p476
      $region50: #{fwd.1} parent=5 // pred_check_branch
        %479 = sbr.rel (%p477) target = $region52
      $region51: #{fwd.1} parent=5 // pred_region
        %s480 = ssub.s32 %s12, 2
        // Predicated region
        $region53: #{fwd.1} parent=51 // pred_check
          %p481 = pneg %p151
        $region54: #{fwd.1} parent=51 // pred_check_branch
          %483 = sbr.rel (%p481) target = $region56
        $region55: #{fwd.1} parent=51 // pred_region
          %p484 = scmp.lt.s32.totalorder %s18, 1
          %s485 = scalar_select %p484, %s18, 1
          %s486 = smul.addr %s485, 8
          %s487 = scalar_lea.vmem %s5, %s486
        $region56: #{fwd.1} parent=51 // pred_fallthru
          _
      $region52: #{fwd.1} parent=5 // pred_fallthru
        _
    $region6: #{fwd.1} parent=1 // loop_footer
      %s16 = sadd.s32 1, %s12
    $region7: #{fwd.1} parent=1 // loop_footer_branch
      %11 = sbr.rel target = $region3
    $region8: #{fwd.1} parent=1 // loop_exit
      _
    %488 = vsyncpa [#allocation3], 1
    %s489 = scalar_lea.sflag [#allocation3], 1
    %490 = vsyncpa %s489, 1

</llo_original>
